<compile_context>
chip_gen: v6e
topology: v6e:2x2x1
jax: 0.10.0
libtpu: 0.0.40
codegen_flags: <defaults>
</compile_context>

<pallas_src>
import math

import jax
import jax.numpy as jnp
from jax.experimental import pallas as pl
from jax.experimental.pallas import tpu as pltpu

# ---- small test configuration, consistent with UpperSample(in_dim, out_dim, hw) ----
B = 2                        # batch
HW = 4                       # input spatial side -> N_IN = hw*hw tokens
N_IN = HW * HW               # 16
IN_DIM = 32
OUT_DIM = 16
K = 4                        # ConvTranspose2d kernel size (stride 2, padding 1)
N_OUT = (2 * HW) * (2 * HW)  # 64 output tokens
EPS = 1e-5                   # BatchNorm eps (PyTorch default)

_GELU_C = 0.7978845608028654  # sqrt(2/pi)


def _gelu(x):
    # TODO(synk): nn.GELU() defaults to the exact erf form; the tanh approximation is
    # used here (Mosaic-safe transcendental) and the in-script reference matches it.
    return 0.5 * x * (1.0 + jnp.tanh(_GELU_C * (x + 0.044715 * x * x * x)))


def _fold_bn(bn):
    """Eval-mode BatchNorm (4,C)=[gamma,beta,mean,var] -> per-channel (scale, shift)."""
    gamma, beta, mean, var = bn[0], bn[1], bn[2], bn[3]
    scale = gamma / jnp.sqrt(var + EPS)
    return scale, beta - mean * scale


def _round_up(v, m):
    return -(-v // m) * m


def upper_sample(x, w1, b1, bn1, wt, bn2, w3, b3, bn3):
    """Eval-mode UpperSample forward as a single Pallas invocation.

    x  : (B, hw*hw, C_IN)
    w1 : (C_IN, C_IN), b1 (1, C_IN), bn1 (4, C_IN)
    wt : (C_IN, C_OUT, 4, 4)   torch ConvTranspose2d weight (stride 2, padding 1, no bias)
    bn2: (4, C_OUT)
    w3 : (C_OUT, C_OUT), b3 (1, C_OUT), bn3 (4, C_OUT)
    """
    b, n_in, c_in = x.shape
    c_out = wt.shape[1]
    hw = math.isqrt(n_in)
    assert hw * hw == n_in
    rows = b * n_in
    kdim = 4 * c_in            # fused per-parity reduction width (= 128 lanes)
    ndim = 4 * c_out           # parity-on-lanes output width   (= 64 lanes)

    x2d = x.reshape(rows, c_in)                     # wrapper-side layout plumbing

    # -------- fold the three eval-mode BatchNorms into the adjacent weights/biases -----
    s1, t1 = _fold_bn(bn1)
    s2, t2 = _fold_bn(bn2)
    s3, t3 = _fold_bn(bn3)
    w1f = w1 * s1[None, :]
    b1f = b1.reshape(1, -1) * s1[None, :] + t1[None, :]
    w3f = w3 * s3[None, :]
    b3f = b3.reshape(1, -1) * s3[None, :] + t3[None, :]

    # -------- ConvTranspose taps -> 4 per-parity (4*C_IN, 4*C_OUT) RHS blocks ----------
    # y[b, 2m+ph, 2n+pw, co] = sum_{t,s} x[b, m+ph+t-1, n+pw+s-1, :] @ W[3-ph-2t, 3-pw-2s]
    # Parity p = 2*ph+pw writes output lanes [p*c_out, (p+1)*c_out).
    wt_k = jnp.transpose(wt, (2, 3, 0, 1)) * s2[None, None, None, :]  # (kh,kw,ci,co), BN2 scale folded
    rhs_blocks = []
    for ph in range(2):
        for pw in range(2):
            p = 2 * ph + pw
            blk = jnp.zeros((kdim, ndim), jnp.float32)
            for q, (t, s) in enumerate([(t, s) for t in range(2) for s in range(2)]):
                tap = wt_k[3 - ph - 2 * t, 3 - pw - 2 * s]            # (ci, co)
                blk = blk.at[q * c_in:(q + 1) * c_in,
                             p * c_out:(p + 1) * c_out].set(tap)
            rhs_blocks.append(blk)
    rhs = jnp.concatenate(rhs_blocks, axis=0)                          # (16*c_in, 4*c_out)

    # -------- precomputed window-validity masks: one (rows, 4*C_IN) block per parity ---
    # The kernel builds windows with circular sublane rolls; any roll that wraps across a
    # batch boundary necessarily has m+dm or n+dn outside [0, hw) and is zeroed here, so
    # the wrap is harmless for this (batch-major) row layout.
    r = jnp.arange(rows)
    m_idx = (r // hw) % hw
    n_idx = r % hw
    mask_blocks = []
    for ph in range(2):
        for pw in range(2):
            cols = []
            for t in range(2):
                for s in range(2):
                    dm, dn = ph + t - 1, pw + s - 1
                    valid = ((m_idx + dm >= 0) & (m_idx + dm < hw) &
                             (n_idx + dn >= 0) & (n_idx + dn < hw)).astype(jnp.float32)
                    cols.append(jnp.tile(valid[:, None], (1, c_in)))
            mask_blocks.append(jnp.concatenate(cols, axis=1))          # (rows, 4*c_in)
    mask = jnp.concatenate(mask_blocks, axis=0)                        # (4*rows, 4*c_in)

    # -------- parity-block-diagonal to_out weight and lane-tiled biases -----------------
    w3big = jnp.kron(jnp.eye(4, dtype=jnp.float32), w3f)               # (4*c_out, 4*c_out)
    b2big = jnp.tile(t2[None, :], (1, 4))                              # (1, 4*c_out)  BN2 shift
    b3big = jnp.tile(b3f, (1, 4))                                      # (1, 4*c_out)

    # -------- pack every parameter into one 128-lane f32 slab (one DMA) -----------------
    lanes = kdim                                                       # 128
    R_RHS = 0
    R_MASK = R_RHS + 4 * kdim
    R_W1 = _round_up(R_MASK + 4 * rows, 8)
    R_W3 = _round_up(R_W1 + c_in, 8)
    R_B1 = _round_up(R_W3 + ndim, 8)
    R_B2 = R_B1 + 8
    R_B3 = R_B2 + 8
    total_rows = _round_up(R_B3 + 8, 8)

    slab = jnp.zeros((total_rows, lanes), jnp.float32)
    slab = slab.at[R_RHS:R_RHS + 4 * kdim, :ndim].set(rhs)
    slab = slab.at[R_MASK:R_MASK + 4 * rows, :].set(mask)
    slab = slab.at[R_W1:R_W1 + c_in, :c_in].set(w1f)
    slab = slab.at[R_W3:R_W3 + ndim, :ndim].set(w3big)
    slab = slab.at[R_B1, :c_in].set(b1f[0])
    slab = slab.at[R_B2, :ndim].set(b2big[0])
    slab = slab.at[R_B3, :ndim].set(b3big[0])

    def kernel(x_ref, slab_ref, o_ref):
        f32 = jnp.float32

        # ---- up_proj: Linear (BN1 folded) -> GELU ----
        w1_k = slab_ref[R_W1:R_W1 + c_in, 0:c_in]
        b1_k = slab_ref[R_B1:R_B1 + 1, 0:c_in]
        h = _gelu(jnp.dot(x_ref[...], w1_k, preferred_element_type=f32) + b1_k)

        # ---- de_conv: ConvTranspose2d(k=4, s=2, p=1), BN2 folded ----
        # h4 holds the four intra-parity window shifts (t*hw+s in {0,1,hw,hw+1}) on the
        # lane axis; each parity's LHS is then just one sublane roll of h4.
        h4 = jnp.concatenate(
            [h if d == 0 else pltpu.roll(h, shift=(-d) % rows, axis=0)
             for d in (0, 1, hw, hw + 1)],
            axis=1)                                                    # (rows, 4*c_in)

        acc = None
        for ph in range(2):
            for pw in range(2):
                p = 2 * ph + pw
                base = (ph - 1) * hw + (pw - 1)
                lhs = h4 if base == 0 else pltpu.roll(h4, shift=(-base) % rows, axis=0)
                lhs = lhs * slab_ref[R_MASK + rows * p:R_MASK + rows * (p + 1), :]
                rhs_p = slab_ref[R_RHS + kdim * p:R_RHS + kdim * (p + 1), 0:ndim]
                term = jnp.dot(lhs, rhs_p, preferred_element_type=f32)  # (rows, 4*c_out)
                acc = term if acc is None else acc + term

        # BN2 shift (scale already folded into rhs) -> GELU, on lane-dense (rows, 64)
        b2_k = slab_ref[R_B2:R_B2 + 1, 0:ndim]
        y = _gelu(acc + b2_k)

        # ---- to_out: block-diagonal Linear (BN3 folded) -> GELU -> Dropout(eval)=id ----
        w3_k = slab_ref[R_W3:R_W3 + ndim, 0:ndim]
        b3_k = slab_ref[R_B3:R_B3 + 1, 0:ndim]
        z = _gelu(jnp.dot(y, w3_k, preferred_element_type=f32) + b3_k)
        o_ref[...] = z.astype(o_ref.dtype)

    out_k = pl.pallas_call(
        kernel,
        out_shape=jax.ShapeDtypeStruct((rows, ndim), jnp.float32),
        in_specs=[pl.BlockSpec(memory_space=pltpu.MemorySpace.VMEM)] * 2,
        out_specs=pl.BlockSpec(memory_space=pltpu.MemorySpace.VMEM),
    )(x2d, slab)

    # De-interleave the lane-packed output parities back into (b, 2hw, 2hw, c) order.
    out = out_k.reshape(b, hw, hw, 2, 2, c_out)       # (b, m, n, ph, pw, co)
    out = out.transpose(0, 1, 3, 2, 4, 5)             # (b, m, ph, n, pw, co)
    out = out.reshape(b, 2 * hw, 2 * hw, c_out)
    return out.reshape(b, 4 * n_in, c_out)


# ---------------- pure-JAX reference (literal transcription, eval mode) ----------------
def upper_sample_ref(x, w1, b1, bn1, wt, bn2, w3, b3, bn3):
    b, n, c_in = x.shape
    c_out = wt.shape[1]
    k = wt.shape[2]

    def bn(v, p):   # v (..., C); p (4, C) = [gamma, beta, mean, var]
        return (v - p[2]) / jnp.sqrt(p[3] + EPS) * p[0] + p[1]

    # up_proj: Linear -> (b n c -> b c n) -> BN1d -> GELU -> (b c (h w) -> b c h w)
    h = _gelu(bn(x @ w1 + b1, bn1))
    h = h.reshape(b, HW, HW, c_in).transpose(0, 3, 1, 2)              # (b, c_in, hw, hw)

    # de_conv: ConvTranspose2d(k=4, s=2, p=1, bias=False)
    ho, wo = 2 * HW, 2 * HW
    y = jnp.zeros((b, c_out, ho, wo), jnp.float32)
    for ih in range(HW):
        for iw in range(HW):
            contrib = jnp.einsum('bc,cdkl->bdkl', h[:, :, ih, iw], wt)  # (b,c_out,k,k)
            oh0, ow0 = 2 * ih - 1, 2 * iw - 1
            kh_lo, kw_lo = max(0, -oh0), max(0, -ow0)
            kh_hi, kw_hi = min(k, ho - oh0), min(k, wo - ow0)
            y = y.at[:, :, oh0 + kh_lo:oh0 + kh_hi, ow0 + kw_lo:ow0 + kw_hi].add(
                contrib[:, :, kh_lo:kh_hi, kw_lo:kw_hi])
    y = y.transpose(0, 2, 3, 1)                                        # (b, ho, wo, c_out)
    y = _gelu(bn(y, bn2))
    y = y.reshape(b, ho * wo, c_out)

    # to_out: Linear -> BN1d -> GELU -> Dropout (eval = identity)
    return _gelu(bn(y @ w3 + b3, bn3))


def _make_bn(key, c):
    k1, k2, k3, k4 = jax.random.split(key, 4)
    gamma = 1.0 + 0.1 * jax.random.normal(k1, (c,), jnp.float32)
    beta = 0.1 * jax.random.normal(k2, (c,), jnp.float32)
    mean = 0.1 * jax.random.normal(k3, (c,), jnp.float32)
    var = jax.random.uniform(k4, (c,), jnp.float32, minval=0.5, maxval=1.5)
    return jnp.stack([gamma, beta, mean, var])


if __name__ == "__main__":
    key = jax.random.PRNGKey(0)
    ks = jax.random.split(key, 9)

    x = jax.random.normal(ks[0], (B, N_IN, IN_DIM), jnp.float32)

    w1 = jax.random.normal(ks[1], (IN_DIM, IN_DIM), jnp.float32) / math.sqrt(IN_DIM)
    b1 = 0.02 * jax.random.normal(ks[2], (1, IN_DIM), jnp.float32)
    bn1 = _make_bn(ks[3], IN_DIM)

    wt = (jax.random.normal(ks[4], (IN_DIM, OUT_DIM, K, K), jnp.float32)
          / math.sqrt(IN_DIM * K * K))                                # torch layout (ci, co, kh, kw)
    bn2 = _make_bn(ks[5], OUT_DIM)

    w3 = jax.random.normal(ks[6], (OUT_DIM, OUT_DIM), jnp.float32) / math.sqrt(OUT_DIM)
    b3 = 0.02 * jax.random.normal(ks[7], (1, OUT_DIM), jnp.float32)
    bn3 = _make_bn(ks[8], OUT_DIM)

    out = upper_sample(x, w1, b1, bn1, wt, bn2, w3, b3, bn3)
    out = jax.block_until_ready(out)

    ref = upper_sample_ref(x, w1, b1, bn1, wt, bn2, w3, b3, bn3)
    assert out.shape == (B, N_OUT, OUT_DIM)
    # tolerance leaves headroom for MXU f32 pass-decomposition / BN-fold summation-order
    assert jnp.allclose(out, ref, rtol=1e-3, atol=1e-3), "mismatch vs reference"

    print("KERNEL_OK")
</pallas_src>

<mosaic_0001>
module attributes {stable_mosaic.version = 11 : i64} {
  func.func @kernel(%arg0: memref<32x32xf32, #tpu.memory_space<vmem>>, %arg1: memref<760x128xf32, #tpu.memory_space<vmem>>, %arg2: memref<32x64xf32, #tpu.memory_space<vmem>>) attributes {dimension_semantics = [], scalar_prefetch = 0 : i64, scratch_operands = 0 : i64, tpu.core_type = #tpu.core_type<tc>} {
    %c640 = arith.constant 640 : index
    %c0 = arith.constant 0 : index
    %0 = vector.load %arg1[%c640, %c0] : memref<760x128xf32, #tpu.memory_space<vmem>>, vector<32x32xf32>
    %c736 = arith.constant 736 : index
    %c0_0 = arith.constant 0 : index
    %1 = vector.load %arg1[%c736, %c0_0] : memref<760x128xf32, #tpu.memory_space<vmem>>, vector<1x32xf32>
    %c0_1 = arith.constant 0 : index
    %c0_2 = arith.constant 0 : index
    %2 = vector.load %arg0[%c0_1, %c0_2] : memref<32x32xf32, #tpu.memory_space<vmem>>, vector<32x32xf32>
    %cst = arith.constant dense<0.000000e+00> : vector<32x32xf32>
    %3 = tpu.matmul %2, %0, %cst {dimension_numbers = #tpu.dot_dimension_numbers<[1], [0], [0], [1], [0, 0, 1, 1], [], []>} : vector<32x32xf32>, vector<32x32xf32>, vector<32x32xf32> -> vector<32x32xf32>
    %4 = vector.broadcast %1 : vector<1x32xf32> to vector<32x32xf32>
    %5 = arith.addf %3, %4 : vector<32x32xf32>
    %cst_3 = arith.constant 5.000000e-01 : f32
    %6 = vector.broadcast %cst_3 : f32 to vector<32x32xf32>
    %7 = arith.mulf %6, %5 : vector<32x32xf32>
    %cst_4 = arith.constant 4.471500e-02 : f32
    %8 = vector.broadcast %cst_4 : f32 to vector<32x32xf32>
    %9 = arith.mulf %8, %5 : vector<32x32xf32>
    %10 = arith.mulf %9, %5 : vector<32x32xf32>
    %11 = arith.mulf %10, %5 : vector<32x32xf32>
    %12 = arith.addf %5, %11 : vector<32x32xf32>
    %cst_5 = arith.constant 0.797884583 : f32
    %13 = vector.broadcast %cst_5 : f32 to vector<32x32xf32>
    %14 = arith.mulf %13, %12 : vector<32x32xf32>
    %15 = math.tanh %14 : vector<32x32xf32>
    %cst_6 = arith.constant 1.000000e+00 : f32
    %16 = vector.broadcast %cst_6 : f32 to vector<32x32xf32>
    %17 = arith.addf %16, %15 : vector<32x32xf32>
    %18 = arith.mulf %7, %17 : vector<32x32xf32>
    %c31_i32 = arith.constant 31 : i32
    %19 = tpu.dynamic_rotate %18 by %c31_i32 dim 0 : vector<32x32xf32>, i32 -> vector<32x32xf32>
    %c28_i32 = arith.constant 28 : i32
    %20 = tpu.dynamic_rotate %18 by %c28_i32 dim 0 : vector<32x32xf32>, i32 -> vector<32x32xf32>
    %c27_i32 = arith.constant 27 : i32
    %21 = tpu.dynamic_rotate %18 by %c27_i32 dim 0 : vector<32x32xf32>, i32 -> vector<32x32xf32>
    %22 = tpu.concatenate %18, %19, %20, %21 in 1 : vector<32x32xf32>, vector<32x32xf32>, vector<32x32xf32>, vector<32x32xf32> -> vector<32x128xf32>
    %c5_i32 = arith.constant 5 : i32
    %23 = tpu.dynamic_rotate %22 by %c5_i32 dim 0 : vector<32x128xf32>, i32 -> vector<32x128xf32>
    %c512 = arith.constant 512 : index
    %c0_7 = arith.constant 0 : index
    %24 = vector.load %arg1[%c512, %c0_7] : memref<760x128xf32, #tpu.memory_space<vmem>>, vector<32x128xf32>
    %25 = arith.mulf %23, %24 : vector<32x128xf32>
    %c0_8 = arith.constant 0 : index
    %c0_9 = arith.constant 0 : index
    %26 = vector.load %arg1[%c0_8, %c0_9] : memref<760x128xf32, #tpu.memory_space<vmem>>, vector<128x64xf32>
    %cst_10 = arith.constant dense<0.000000e+00> : vector<32x64xf32>
    %27 = tpu.matmul %25, %26, %cst_10 {dimension_numbers = #tpu.dot_dimension_numbers<[1], [0], [0], [1], [0, 0, 1, 1], [], []>} : vector<32x128xf32>, vector<128x64xf32>, vector<32x64xf32> -> vector<32x64xf32>
    %c4_i32 = arith.constant 4 : i32
    %28 = tpu.dynamic_rotate %22 by %c4_i32 dim 0 : vector<32x128xf32>, i32 -> vector<32x128xf32>
    %c544 = arith.constant 544 : index
    %c0_11 = arith.constant 0 : index
    %29 = vector.load %arg1[%c544, %c0_11] : memref<760x128xf32, #tpu.memory_space<vmem>>, vector<32x128xf32>
    %30 = arith.mulf %28, %29 : vector<32x128xf32>
    %c128 = arith.constant 128 : index
    %c0_12 = arith.constant 0 : index
    %31 = vector.load %arg1[%c128, %c0_12] : memref<760x128xf32, #tpu.memory_space<vmem>>, vector<128x64xf32>
    %cst_13 = arith.constant dense<0.000000e+00> : vector<32x64xf32>
    %32 = tpu.matmul %30, %31, %cst_13 {dimension_numbers = #tpu.dot_dimension_numbers<[1], [0], [0], [1], [0, 0, 1, 1], [], []>} : vector<32x128xf32>, vector<128x64xf32>, vector<32x64xf32> -> vector<32x64xf32>
    %33 = arith.addf %27, %32 : vector<32x64xf32>
    %c1_i32 = arith.constant 1 : i32
    %34 = tpu.dynamic_rotate %22 by %c1_i32 dim 0 : vector<32x128xf32>, i32 -> vector<32x128xf32>
    %c576 = arith.constant 576 : index
    %c0_14 = arith.constant 0 : index
    %35 = vector.load %arg1[%c576, %c0_14] : memref<760x128xf32, #tpu.memory_space<vmem>>, vector<32x128xf32>
    %36 = arith.mulf %34, %35 : vector<32x128xf32>
    %c256 = arith.constant 256 : index
    %c0_15 = arith.constant 0 : index
    %37 = vector.load %arg1[%c256, %c0_15] : memref<760x128xf32, #tpu.memory_space<vmem>>, vector<128x64xf32>
    %cst_16 = arith.constant dense<0.000000e+00> : vector<32x64xf32>
    %38 = tpu.matmul %36, %37, %cst_16 {dimension_numbers = #tpu.dot_dimension_numbers<[1], [0], [0], [1], [0, 0, 1, 1], [], []>} : vector<32x128xf32>, vector<128x64xf32>, vector<32x64xf32> -> vector<32x64xf32>
    %39 = arith.addf %33, %38 : vector<32x64xf32>
    %c608 = arith.constant 608 : index
    %c0_17 = arith.constant 0 : index
    %40 = vector.load %arg1[%c608, %c0_17] : memref<760x128xf32, #tpu.memory_space<vmem>>, vector<32x128xf32>
    %41 = arith.mulf %22, %40 : vector<32x128xf32>
    %c384 = arith.constant 384 : index
    %c0_18 = arith.constant 0 : index
    %42 = vector.load %arg1[%c384, %c0_18] : memref<760x128xf32, #tpu.memory_space<vmem>>, vector<128x64xf32>
    %cst_19 = arith.constant dense<0.000000e+00> : vector<32x64xf32>
    %43 = tpu.matmul %41, %42, %cst_19 {dimension_numbers = #tpu.dot_dimension_numbers<[1], [0], [0], [1], [0, 0, 1, 1], [], []>} : vector<32x128xf32>, vector<128x64xf32>, vector<32x64xf32> -> vector<32x64xf32>
    %44 = arith.addf %39, %43 : vector<32x64xf32>
    %c744 = arith.constant 744 : index
    %c0_20 = arith.constant 0 : index
    %45 = vector.load %arg1[%c744, %c0_20] : memref<760x128xf32, #tpu.memory_space<vmem>>, vector<1x64xf32>
    %46 = vector.broadcast %45 : vector<1x64xf32> to vector<32x64xf32>
    %47 = arith.addf %44, %46 : vector<32x64xf32>
    %cst_21 = arith.constant 5.000000e-01 : f32
    %48 = vector.broadcast %cst_21 : f32 to vector<32x64xf32>
    %49 = arith.mulf %48, %47 : vector<32x64xf32>
    %cst_22 = arith.constant 4.471500e-02 : f32
    %50 = vector.broadcast %cst_22 : f32 to vector<32x64xf32>
    %51 = arith.mulf %50, %47 : vector<32x64xf32>
    %52 = arith.mulf %51, %47 : vector<32x64xf32>
    %53 = arith.mulf %52, %47 : vector<32x64xf32>
    %54 = arith.addf %47, %53 : vector<32x64xf32>
    %cst_23 = arith.constant 0.797884583 : f32
    %55 = vector.broadcast %cst_23 : f32 to vector<32x64xf32>
    %56 = arith.mulf %55, %54 : vector<32x64xf32>
    %57 = math.tanh %56 : vector<32x64xf32>
    %cst_24 = arith.constant 1.000000e+00 : f32
    %58 = vector.broadcast %cst_24 : f32 to vector<32x64xf32>
    %59 = arith.addf %58, %57 : vector<32x64xf32>
    %60 = arith.mulf %49, %59 : vector<32x64xf32>
    %c672 = arith.constant 672 : index
    %c0_25 = arith.constant 0 : index
    %61 = vector.load %arg1[%c672, %c0_25] : memref<760x128xf32, #tpu.memory_space<vmem>>, vector<64x64xf32>
    %c752 = arith.constant 752 : index
    %c0_26 = arith.constant 0 : index
    %62 = vector.load %arg1[%c752, %c0_26] : memref<760x128xf32, #tpu.memory_space<vmem>>, vector<1x64xf32>
    %cst_27 = arith.constant dense<0.000000e+00> : vector<32x64xf32>
    %63 = tpu.matmul %60, %61, %cst_27 {dimension_numbers = #tpu.dot_dimension_numbers<[1], [0], [0], [1], [0, 0, 1, 1], [], []>} : vector<32x64xf32>, vector<64x64xf32>, vector<32x64xf32> -> vector<32x64xf32>
    %64 = vector.broadcast %62 : vector<1x64xf32> to vector<32x64xf32>
    %65 = arith.addf %63, %64 : vector<32x64xf32>
    %cst_28 = arith.constant 5.000000e-01 : f32
    %66 = vector.broadcast %cst_28 : f32 to vector<32x64xf32>
    %67 = arith.mulf %66, %65 : vector<32x64xf32>
    %cst_29 = arith.constant 4.471500e-02 : f32
    %68 = vector.broadcast %cst_29 : f32 to vector<32x64xf32>
    %69 = arith.mulf %68, %65 : vector<32x64xf32>
    %70 = arith.mulf %69, %65 : vector<32x64xf32>
    %71 = arith.mulf %70, %65 : vector<32x64xf32>
    %72 = arith.addf %65, %71 : vector<32x64xf32>
    %cst_30 = arith.constant 0.797884583 : f32
    %73 = vector.broadcast %cst_30 : f32 to vector<32x64xf32>
    %74 = arith.mulf %73, %72 : vector<32x64xf32>
    %75 = math.tanh %74 : vector<32x64xf32>
    %cst_31 = arith.constant 1.000000e+00 : f32
    %76 = vector.broadcast %cst_31 : f32 to vector<32x64xf32>
    %77 = arith.addf %76, %75 : vector<32x64xf32>
    %78 = arith.mulf %67, %77 : vector<32x64xf32>
    %c0_32 = arith.constant 0 : index
    %c0_33 = arith.constant 0 : index
    %79 = vector.load %arg2[%c0_32, %c0_33] : memref<32x64xf32, #tpu.memory_space<vmem>>, vector<32x64xf32>
    tpu.vector_store %arg2[%c0_32, %c0_33], %78 {strides = array<i32>} : memref<32x64xf32, #tpu.memory_space<vmem>>, vector<32x64xf32>,
    return
  }
}

</mosaic_0001>

<llo_original>
// kernel: tpu_custom_call.1
$region0: #{tpu_custom_call.1}
  #allocation0 [shape = 'u32[]', space=smem, size = 0x4, offset = 0x4, fixed_abs, tag = 'smem constant byte address 0x4 - core index']
  #allocation1 [shape = 'u32[144,128]{1,0:T(1,128)}', space=vmem, size = 0x12000, scoped, tag = 'internal scratch']
  %s0 = inlined_call_operand.hbm [shape: f32[32,32], index: 0, kind: input, shape index: {}]
  %s1 = inlined_call_operand.hbm [shape: f32[760,128], index: 1, kind: input, shape index: {}]
  %s2 = inlined_call_operand.hbm [shape: f32[32,64], index: 2, kind: output, shape index: {}]
  %s3 = sld [smem:[#allocation0]]
  $region26: #{tpu_custom_call.1} parent=0
    _
  %s5 = ssub.s32 1, %s3
  %s6 = scalar_select 0, %s5, %s3
  $region1: #{tpu_custom_call.1} parent=0
    #allocation2 [shape = 'u8[16384]{0}', space=vmem, size = 0x4000, scoped, tag = 'input window, operand 0, single buffered']
    #allocation3 [shape = 's32[1]{0}', space=sflag, size = 0x4, scoped, tag = 'scoped memory for tpu_custom_call.1']
    #allocation4 [shape = 's32[1]{0}', space=sflag, size = 0x4, scoped, tag = 'scoped memory for tpu_custom_call.1']
    #allocation5 [shape = 'u8[389120]{0}', space=vmem, size = 0x5f000, scoped, tag = 'input window, operand 1, single buffered']
    #allocation6 [shape = 's32[1]{0}', space=sflag, size = 0x4, scoped, tag = 'scoped memory for tpu_custom_call.1']
    #allocation7 [shape = 'u8[16384]{0}', space=vmem, size = 0x4000, scoped, tag = 'output window, operand 0, single buffered']
    %7 = vsyncpa [#allocation3], 0
    %8 = vsyncpa [#allocation6], 0
    %9 = vsyncpa [#allocation4], 0
    // Predicated region
    $region2: #{tpu_custom_call.1} parent=1 // pred_check
      _
    $region3: #{tpu_custom_call.1} parent=1 // pred_check_branch
      %11 = sbr.rel (0) target = $region5
    $region4: #{tpu_custom_call.1} parent=1 // pred_region
      %s13 = ssub.s32 512, 512
      %14 = vsyncadd [#allocation3], %s13
      %s15 = sshll.u32 [#allocation2], 4
      %s16 = int_to_ptr.vmem [resolvable:$true] %s15
      %21 = dma.hbm_to_vmem [thread:$0]  %s0, 512, %s16, [#allocation3], 128, 128, 8
    $region5: #{tpu_custom_call.1} parent=1 // pred_fallthru
      _
    // Predicated region
    $region6: #{tpu_custom_call.1} parent=1 // pred_check
      _
    $region7: #{tpu_custom_call.1} parent=1 // pred_check_branch
      %23 = sbr.rel (0) target = $region9
    $region8: #{tpu_custom_call.1} parent=1 // pred_region
      %s25 = ssub.s32 12160, 12160
      %26 = vsyncadd [#allocation6], %s25
      %s27 = sshll.u32 [#allocation5], 4
      %s28 = int_to_ptr.vmem [resolvable:$true] %s27
      %33 = dma.hbm_to_vmem [thread:$0]  %s1, 12160, %s28, [#allocation6], 128, 128, 8
    $region9: #{tpu_custom_call.1} parent=1 // pred_fallthru
      _
    // Predicated region
    $region10: #{tpu_custom_call.1} parent=1 // pred_check
      _
    $region11: #{tpu_custom_call.1} parent=1 // pred_check_branch
      %35 = sbr.rel (0) target = $region13
    $region12: #{tpu_custom_call.1} parent=1 // pred_region
      %36 = dma.done [#allocation3], 512
    $region13: #{tpu_custom_call.1} parent=1 // pred_fallthru
      _
    // Predicated region
    $region14: #{tpu_custom_call.1} parent=1 // pred_check
      _
    $region15: #{tpu_custom_call.1} parent=1 // pred_check_branch
      %38 = sbr.rel (0) target = $region17
    $region16: #{tpu_custom_call.1} parent=1 // pred_region
      %39 = dma.done [#allocation6], 12160
    $region17: #{tpu_custom_call.1} parent=1 // pred_fallthru
      _
    %v40 = vld [vmem:[#allocation5 + $0x280] sm:$0xff]
    %v41 = vld [vmem:[#allocation5 + $0x288] sm:$0xff]
    %v42 = vld [vmem:[#allocation5 + $0x290] sm:$0xff]
    %v43 = vld [vmem:[#allocation5 + $0x298] sm:$0xff]
    %v44 = vld [vmem:[#allocation5 + $0x2e0] sm:$0x1]
    %v45 = vld [vmem:[#allocation2] sm:$0xff]
    %v46 = vld [vmem:[#allocation2 + $0x8] sm:$0xff]
    %v47 = vld [vmem:[#allocation2 + $0x10] sm:$0xff]
    %v48 = vld [vmem:[#allocation2 + $0x18] sm:$0xff]
    %v49 = vlaneseq
    %v50 = vshrl.u32 %v49, 7
    %v51 = vsub.s32 0, %v50
    %v52 = vrot.slane %v44, %v51
    %vm53 = vcmask 261120
    %v55 = vsel %vm53, %v45, 0
    %v58 = vsel %vm53, %v46, 0
    %v61 = vsel %vm53, %v47, 0
    %v64 = vsel %vm53, %v48, 0
    %66 = vmatprep.subr.mxu0 0.0
    %67 = vmatpush1.msra.mxu0 0.0
    %68 = vmatprep.subr.mxu0 0.0
    %69 = vmatpush1.msra.mxu0 0.0
    %70 = vmatprep.subr.mxu0 0.0
    %71 = vmatpush1.msra.mxu0 0.0
    %72 = vmatprep.subr.mxu0 0.0
    %73 = vmatpush1.msra.mxu0 0.0
    %74 = vmatprep.subr.mxu0 0.0
    %75 = vmatpush1.msra.mxu0 0.0
    %76 = vmatprep.subr.mxu0 0.0
    %77 = vmatpush1.msra.mxu0 0.0
    %78 = vmatprep.subr.mxu0 0.0
    %79 = vmatpush1.msra.mxu0 0.0
    %80 = vmatprep.subr.mxu0 0.0
    %81 = vmatpush1.msra.mxu0 0.0
    %82 = vmatprep.subr.mxu0 0.0
    %83 = vmatpush1.msra.mxu0 0.0
    %84 = vmatprep.subr.mxu0 0.0
    %85 = vmatpush1.msra.mxu0 0.0
    %86 = vmatprep.subr.mxu0 0.0
    %87 = vmatpush1.msra.mxu0 0.0
    %88 = vmatprep.subr.mxu0 0.0
    %89 = vmatpush1.msra.mxu0 0.0
    %90 = vmatprep.subr.mxu0 0.0
    %91 = vmatpush1.msra.mxu0 %v43
    %92 = vmatprep.subr.mxu0 0.0
    %93 = vmatpush1.msra.mxu0 %v42
    %94 = vmatprep.subr.mxu0 0.0
    %95 = vmatpush1.msra.mxu0 %v41
    %96 = vmatprep.subr.mxu0 0.0
    %97 = vmatpush1.msra.mxu0 %v40
    %98 = vmatprep.subr.mxu0 0.0
    %99 = vmatpush2.msra.mxu0 0.0
    %100 = vmatprep.subr.mxu0 0.0
    %101 = vmatpush2.msra.mxu0 0.0
    %102 = vmatprep.subr.mxu0 0.0
    %103 = vmatpush2.msra.mxu0 0.0
    %104 = vmatprep.subr.mxu0 0.0
    %105 = vmatpush2.msra.mxu0 0.0
    %106 = vmatprep.subr.mxu0 0.0
    %107 = vmatpush2.msra.mxu0 0.0
    %108 = vmatprep.subr.mxu0 0.0
    %109 = vmatpush2.msra.mxu0 0.0
    %110 = vmatprep.subr.mxu0 0.0
    %111 = vmatpush2.msra.mxu0 0.0
    %112 = vmatprep.subr.mxu0 0.0
    %113 = vmatpush2.msra.mxu0 0.0
    %114 = vmatprep.subr.mxu0 0.0
    %115 = vmatpush2.msra.mxu0 0.0
    %116 = vmatprep.subr.mxu0 0.0
    %117 = vmatpush2.msra.mxu0 0.0
    %118 = vmatprep.subr.mxu0 0.0
    %119 = vmatpush2.msra.mxu0 0.0
    %120 = vmatprep.subr.mxu0 0.0
    %121 = vmatpush2.msra.mxu0 0.0
    %122 = vmatprep.subr.mxu0 0.0
    %123 = vmatpush2.msra.mxu0 0.0
    %124 = vmatprep.subr.mxu0 0.0
    %125 = vmatpush2.msra.mxu0 0.0
    %126 = vmatprep.subr.mxu0 0.0
    %127 = vmatpush2.msra.mxu0 0.0
    %128 = vmatprep.subr.mxu0 0.0
    %129 = vmatpush2.msra.mxu0 0.0
    %130 = vmatprep.mubr.f32.mxu0 0.0
    %131 = vmatmul.mubr.f32.gmra.mxu0 %v55
    %v132 = vpop.f32.mrf.mxu0
    %v133 = vadd.f32 %v52, %v132
    %v134 = vpop.f32.mrf.mxu0
    %135 = vmatprep.mubr.f32.mxu0 0.0
    %136 = vmatmul.mubr.f32.gmra.mxu0 %v58
    %v137 = vpop.f32.mrf.mxu0
    %v138 = vadd.f32 %v52, %v137
    %v139 = vpop.f32.mrf.mxu0
    %140 = vmatprep.mubr.f32.mxu0 0.0
    %141 = vmatmul.mubr.f32.gmra.mxu0 %v61
    %v142 = vpop.f32.mrf.mxu0
    %v143 = vadd.f32 %v52, %v142
    %v144 = vpop.f32.mrf.mxu0
    %145 = vmatprep.mubr.f32.mxu0 0.0
    %146 = vmatmul.mubr.f32.gmra.mxu0 %v64
    %v147 = vpop.f32.mrf.mxu0
    %v148 = vadd.f32 %v52, %v147
    %v149 = vpop.f32.mrf.mxu0
    %150 = vdwg.mxu0
    %v151 = vmul.f32 %v133, 0.5
    %v152 = vmul.f32 %v138, 0.5
    %v153 = vmul.f32 %v143, 0.5
    %v154 = vmul.f32 %v148, 0.5
    %v155 = vmul.f32 %v133, 0.044715
    %v156 = vmul.f32 %v138, 0.044715
    %v157 = vmul.f32 %v143, 0.044715
    %v158 = vmul.f32 %v148, 0.044715
    %v159 = vmul.f32 %v155, %v133
    %v160 = vmul.f32 %v156, %v138
    %v161 = vmul.f32 %v157, %v143
    %v162 = vmul.f32 %v158, %v148
    %v163 = vmul.f32 %v159, %v133
    %v164 = vmul.f32 %v160, %v138
    %v165 = vmul.f32 %v161, %v143
    %v166 = vmul.f32 %v162, %v148
    %v167 = vadd.f32 %v133, %v163
    %v168 = vadd.f32 %v138, %v164
    %v169 = vadd.f32 %v143, %v165
    %v170 = vadd.f32 %v148, %v166
    %v171 = vmul.f32 %v167, 0.7978846
    %v172 = vmul.f32 %v168, 0.7978846
    %v173 = vmul.f32 %v169, 0.7978846
    %v174 = vmul.f32 %v170, 0.7978846
    %v175 = vtanh.pop %v171
    %v176 = vtanh.pop %v172
    %v177 = vtanh.pop %v173
    %v178 = vtanh.pop %v174
    %v179 = vadd.f32 %v175, 1.0
    %v180 = vadd.f32 %v176, 1.0
    %v181 = vadd.f32 %v177, 1.0
    %v182 = vadd.f32 %v178, 1.0
    %v183 = vmul.f32 %v151, %v179
    %v184 = vmul.f32 %v152, %v180
    %v185 = vmul.f32 %v153, %v181
    %v186 = vmul.f32 %v154, %v182
    %v187 = vrot.slane %v183, 1
    %v188 = vrot.slane %v184, 1
    %v189 = vrot.slane %v185, 1
    %v190 = vrot.slane %v186, 1
    %v191 = vlaneseq
    %v192 = vshrl.u32 %v191, 7
    %vm193 = vcmp.lt.s32.totalorder %v192, 7
    %v194 = vsel %vm193, %v189, %v190
    %v195 = vsel %vm193, %v188, %v189
    %v196 = vsel %vm193, %v187, %v188
    %v197 = vsel %vm193, %v190, %v187
    %v198 = vrot.slane %v183, 4
    %v199 = vrot.slane %v184, 4
    %v200 = vrot.slane %v185, 4
    %v201 = vrot.slane %v186, 4
    %vm202 = vcmp.lt.s32.totalorder %v192, 4
    %v203 = vsel %vm202, %v200, %v201
    %v204 = vsel %vm202, %v199, %v200
    %v205 = vsel %vm202, %v198, %v199
    %v206 = vsel %vm202, %v201, %v198
    %v207 = vrot.slane %v183, 5
    %v208 = vrot.slane %v184, 5
    %v209 = vrot.slane %v185, 5
    %v210 = vrot.slane %v186, 5
    %vm211 = vcmp.lt.s32.totalorder %v192, 3
    %v212 = vsel %vm211, %v209, %v210
    %v213 = vsel %vm211, %v208, %v209
    %v214 = vsel %vm211, %v207, %v208
    %v215 = vsel %vm211, %v210, %v207
    %220 = vrot.lane.b32.xlu0 %v196, 32
    %v221 = vpop.permute.xlu0 %220
    %222 = vrot.lane.b32.xlu0 %v195, 32
    %v223 = vpop.permute.xlu0 %222
    %224 = vrot.lane.b32.xlu0 %v194, 32
    %v225 = vpop.permute.xlu0 %224
    %226 = vrot.lane.b32.xlu0 %v197, 32
    %v227 = vpop.permute.xlu0 %226
    %236 = vrot.lane.b32.xlu0 %v205, 64
    %v237 = vpop.permute.xlu0 %236
    %238 = vrot.lane.b32.xlu0 %v204, 64
    %v239 = vpop.permute.xlu0 %238
    %240 = vrot.lane.b32.xlu0 %v203, 64
    %v241 = vpop.permute.xlu0 %240
    %242 = vrot.lane.b32.xlu0 %v206, 64
    %v243 = vpop.permute.xlu0 %242
    %252 = vrot.lane.b32.xlu0 %v214, 96
    %v253 = vpop.permute.xlu0 %252
    %254 = vrot.lane.b32.xlu0 %v213, 96
    %v255 = vpop.permute.xlu0 %254
    %256 = vrot.lane.b32.xlu0 %v212, 96
    %v257 = vpop.permute.xlu0 %256
    %258 = vrot.lane.b32.xlu0 %v215, 96
    %v259 = vpop.permute.xlu0 %258
    %v264 = vsel %vm53, %v183, %v221
    %v265 = vsel %vm53, %v184, %v223
    %v266 = vsel %vm53, %v185, %v225
    %v267 = vsel %vm53, %v186, %v227
    %vm268 = vcmask 523264
    %v269 = vsel %vm268, %v264, %v237
    %v270 = vsel %vm268, %v265, %v239
    %v271 = vsel %vm268, %v266, %v241
    %v272 = vsel %vm268, %v267, %v243
    %vm273 = vcmask 785408
    %v274 = vsel %vm273, %v269, %v253
    %v275 = vsel %vm273, %v270, %v255
    %v276 = vsel %vm273, %v271, %v257
    %v277 = vsel %vm273, %v272, %v259
    %v278 = vrot.slane %v274, 3
    %v279 = vrot.slane %v275, 3
    %v280 = vrot.slane %v276, 3
    %v281 = vrot.slane %v277, 3
    %vm282 = vcmp.lt.s32.totalorder %v192, 5
    %v283 = vsel %vm282, %v280, %v281
    %v284 = vsel %vm282, %v279, %v280
    %v285 = vsel %vm282, %v278, %v279
    %v286 = vsel %vm282, %v281, %v278
    %v287 = vld [vmem:[#allocation5 + $0x200] sm:$0xff]
    %v288 = vld [vmem:[#allocation5 + $0x208] sm:$0xff]
    %v289 = vld [vmem:[#allocation5 + $0x210] sm:$0xff]
    %v290 = vld [vmem:[#allocation5 + $0x218] sm:$0xff]
    %v291 = vmul.f32 %v286, %v287
    %v292 = vmul.f32 %v285, %v288
    %v293 = vmul.f32 %v284, %v289
    %v294 = vmul.f32 %v283, %v290
    %v295 = vld [vmem:[#allocation5] sm:$0xff]
    %v296 = vld [vmem:[#allocation5 + $0x8] sm:$0xff]
    %v297 = vld [vmem:[#allocation5 + $0x10] sm:$0xff]
    %v298 = vld [vmem:[#allocation5 + $0x18] sm:$0xff]
    %v299 = vld [vmem:[#allocation5 + $0x20] sm:$0xff]
    %v300 = vld [vmem:[#allocation5 + $0x28] sm:$0xff]
    %v301 = vld [vmem:[#allocation5 + $0x30] sm:$0xff]
    %v302 = vld [vmem:[#allocation5 + $0x38] sm:$0xff]
    %v303 = vld [vmem:[#allocation5 + $0x40] sm:$0xff]
    %v304 = vld [vmem:[#allocation5 + $0x48] sm:$0xff]
    %v305 = vld [vmem:[#allocation5 + $0x50] sm:$0xff]
    %v306 = vld [vmem:[#allocation5 + $0x58] sm:$0xff]
    %v307 = vld [vmem:[#allocation5 + $0x60] sm:$0xff]
    %v308 = vld [vmem:[#allocation5 + $0x68] sm:$0xff]
    %v309 = vld [vmem:[#allocation5 + $0x70] sm:$0xff]
    %v310 = vld [vmem:[#allocation5 + $0x78] sm:$0xff]
    %v311 = vrot.slane %v274, 4
    %v312 = vrot.slane %v275, 4
    %v313 = vrot.slane %v276, 4
    %v314 = vrot.slane %v277, 4
    %v315 = vsel %vm202, %v313, %v314
    %v316 = vsel %vm202, %v312, %v313
    %v317 = vsel %vm202, %v311, %v312
    %v318 = vsel %vm202, %v314, %v311
    %v319 = vld [vmem:[#allocation5 + $0x220] sm:$0xff]
    %v320 = vld [vmem:[#allocation5 + $0x228] sm:$0xff]
    %v321 = vld [vmem:[#allocation5 + $0x230] sm:$0xff]
    %v322 = vld [vmem:[#allocation5 + $0x238] sm:$0xff]
    %v323 = vmul.f32 %v318, %v319
    %v324 = vmul.f32 %v317, %v320
    %v325 = vmul.f32 %v316, %v321
    %v326 = vmul.f32 %v315, %v322
    %v327 = vld [vmem:[#allocation5 + $0x80] sm:$0xff]
    %v328 = vld [vmem:[#allocation5 + $0x88] sm:$0xff]
    %v329 = vld [vmem:[#allocation5 + $0x90] sm:$0xff]
    %v330 = vld [vmem:[#allocation5 + $0x98] sm:$0xff]
    %v331 = vld [vmem:[#allocation5 + $0xa0] sm:$0xff]
    %v332 = vld [vmem:[#allocation5 + $0xa8] sm:$0xff]
    %v333 = vld [vmem:[#allocation5 + $0xb0] sm:$0xff]
    %v334 = vld [vmem:[#allocation5 + $0xb8] sm:$0xff]
    %v335 = vld [vmem:[#allocation5 + $0xc0] sm:$0xff]
    %v336 = vld [vmem:[#allocation5 + $0xc8] sm:$0xff]
    %v337 = vld [vmem:[#allocation5 + $0xd0] sm:$0xff]
    %v338 = vld [vmem:[#allocation5 + $0xd8] sm:$0xff]
    %v339 = vld [vmem:[#allocation5 + $0xe0] sm:$0xff]
    %v340 = vld [vmem:[#allocation5 + $0xe8] sm:$0xff]
    %v341 = vld [vmem:[#allocation5 + $0xf0] sm:$0xff]
    %v342 = vld [vmem:[#allocation5 + $0xf8] sm:$0xff]
    %343 = vmatprep.subr.mxu0 0.0
    %344 = vmatpush1.msra.mxu0 %v342
    %345 = vmatprep.subr.mxu0 0.0
    %346 = vmatpush1.msra.mxu0 %v341
    %347 = vmatprep.subr.mxu0 0.0
    %348 = vmatpush1.msra.mxu0 %v340
    %349 = vmatprep.subr.mxu0 0.0
    %350 = vmatpush1.msra.mxu0 %v339
    %351 = vmatprep.subr.mxu0 0.0
    %352 = vmatpush1.msra.mxu0 %v338
    %353 = vmatprep.subr.mxu0 0.0
    %354 = vmatpush1.msra.mxu0 %v337
    %355 = vmatprep.subr.mxu0 0.0
    %356 = vmatpush1.msra.mxu0 %v336
    %357 = vmatprep.subr.mxu0 0.0
    %358 = vmatpush1.msra.mxu0 %v335
    %359 = vmatprep.subr.mxu0 0.0
    %360 = vmatpush1.msra.mxu0 %v334
    %361 = vmatprep.subr.mxu0 0.0
    %362 = vmatpush1.msra.mxu0 %v333
    %363 = vmatprep.subr.mxu0 0.0
    %364 = vmatpush1.msra.mxu0 %v332
    %365 = vmatprep.subr.mxu0 0.0
    %366 = vmatpush1.msra.mxu0 %v331
    %367 = vmatprep.subr.mxu0 0.0
    %368 = vmatpush1.msra.mxu0 %v330
    %369 = vmatprep.subr.mxu0 0.0
    %370 = vmatpush1.msra.mxu0 %v329
    %371 = vmatprep.subr.mxu0 0.0
    %372 = vmatpush1.msra.mxu0 %v328
    %373 = vmatprep.subr.mxu0 0.0
    %374 = vmatpush1.msra.mxu0 %v327
    %375 = vmatprep.subr.mxu0 0.0
    %376 = vmatpush2.msra.mxu0 0.0
    %377 = vmatprep.subr.mxu0 0.0
    %378 = vmatpush2.msra.mxu0 0.0
    %379 = vmatprep.subr.mxu0 0.0
    %380 = vmatpush2.msra.mxu0 0.0
    %381 = vmatprep.subr.mxu0 0.0
    %382 = vmatpush2.msra.mxu0 0.0
    %383 = vmatprep.subr.mxu0 0.0
    %384 = vmatpush2.msra.mxu0 0.0
    %385 = vmatprep.subr.mxu0 0.0
    %386 = vmatpush2.msra.mxu0 0.0
    %387 = vmatprep.subr.mxu0 0.0
    %388 = vmatpush2.msra.mxu0 0.0
    %389 = vmatprep.subr.mxu0 0.0
    %390 = vmatpush2.msra.mxu0 0.0
    %391 = vmatprep.subr.mxu0 0.0
    %392 = vmatpush2.msra.mxu0 0.0
    %393 = vmatprep.subr.mxu0 0.0
    %394 = vmatpush2.msra.mxu0 0.0
    %395 = vmatprep.subr.mxu0 0.0
    %396 = vmatpush2.msra.mxu0 0.0
    %397 = vmatprep.subr.mxu0 0.0
    %398 = vmatpush2.msra.mxu0 0.0
    %399 = vmatprep.subr.mxu0 0.0
    %400 = vmatpush2.msra.mxu0 0.0
    %401 = vmatprep.subr.mxu0 0.0
    %402 = vmatpush2.msra.mxu0 0.0
    %403 = vmatprep.subr.mxu0 0.0
    %404 = vmatpush2.msra.mxu0 0.0
    %405 = vmatprep.subr.mxu0 0.0
    %406 = vmatpush2.msra.mxu0 0.0
    %407 = vmatprep.mubr.f32.mxu0 0.0
    %408 = vmatmul.mubr.f32.gmra.mxu0 %v323
    %v409 = vpop.f32.mrf.mxu0
    %v410 = vadd.f32 0.0, %v409
    %v411 = vpop.f32.mrf.mxu0
    %412 = vmatprep.mubr.f32.mxu0 0.0
    %413 = vmatmul.mubr.f32.gmra.mxu0 %v324
    %v414 = vpop.f32.mrf.mxu0
    %v415 = vadd.f32 0.0, %v414
    %v416 = vpop.f32.mrf.mxu0
    %417 = vmatprep.mubr.f32.mxu0 0.0
    %418 = vmatmul.mubr.f32.gmra.mxu0 %v325
    %v419 = vpop.f32.mrf.mxu0
    %v420 = vadd.f32 0.0, %v419
    %v421 = vpop.f32.mrf.mxu0
    %422 = vmatprep.mubr.f32.mxu0 0.0
    %423 = vmatmul.mubr.f32.gmra.mxu0 %v326
    %v424 = vpop.f32.mrf.mxu0
    %v425 = vadd.f32 0.0, %v424
    %v426 = vpop.f32.mrf.mxu0
    %427 = vdwg.mxu0
    %428 = vmatprep.subr.mxu0 0.0
    %429 = vmatpush1.msra.mxu0 %v310
    %430 = vmatprep.subr.mxu0 0.0
    %431 = vmatpush1.msra.mxu0 %v309
    %432 = vmatprep.subr.mxu0 0.0
    %433 = vmatpush1.msra.mxu0 %v308
    %434 = vmatprep.subr.mxu0 0.0
    %435 = vmatpush1.msra.mxu0 %v307
    %436 = vmatprep.subr.mxu0 0.0
    %437 = vmatpush1.msra.mxu0 %v306
    %438 = vmatprep.subr.mxu0 0.0
    %439 = vmatpush1.msra.mxu0 %v305
    %440 = vmatprep.subr.mxu0 0.0
    %441 = vmatpush1.msra.mxu0 %v304
    %442 = vmatprep.subr.mxu0 0.0
    %443 = vmatpush1.msra.mxu0 %v303
    %444 = vmatprep.subr.mxu0 0.0
    %445 = vmatpush1.msra.mxu0 %v302
    %446 = vmatprep.subr.mxu0 0.0
    %447 = vmatpush1.msra.mxu0 %v301
    %448 = vmatprep.subr.mxu0 0.0
    %449 = vmatpush1.msra.mxu0 %v300
    %450 = vmatprep.subr.mxu0 0.0
    %451 = vmatpush1.msra.mxu0 %v299
    %452 = vmatprep.subr.mxu0 0.0
    %453 = vmatpush1.msra.mxu0 %v298
    %454 = vmatprep.subr.mxu0 0.0
    %455 = vmatpush1.msra.mxu0 %v297
    %456 = vmatprep.subr.mxu0 0.0
    %457 = vmatpush1.msra.mxu0 %v296
    %458 = vmatprep.subr.mxu0 0.0
    %459 = vmatpush1.msra.mxu0 %v295
    %460 = vmatprep.subr.mxu0 0.0
    %461 = vmatpush2.msra.mxu0 0.0
    %462 = vmatprep.subr.mxu0 0.0
    %463 = vmatpush2.msra.mxu0 0.0
    %464 = vmatprep.subr.mxu0 0.0
    %465 = vmatpush2.msra.mxu0 0.0
    %466 = vmatprep.subr.mxu0 0.0
    %467 = vmatpush2.msra.mxu0 0.0
    %468 = vmatprep.subr.mxu0 0.0
    %469 = vmatpush2.msra.mxu0 0.0
    %470 = vmatprep.subr.mxu0 0.0
    %471 = vmatpush2.msra.mxu0 0.0
    %472 = vmatprep.subr.mxu0 0.0
    %473 = vmatpush2.msra.mxu0 0.0
    %474 = vmatprep.subr.mxu0 0.0
    %475 = vmatpush2.msra.mxu0 0.0
    %476 = vmatprep.subr.mxu0 0.0
    %477 = vmatpush2.msra.mxu0 0.0
    %478 = vmatprep.subr.mxu0 0.0
    %479 = vmatpush2.msra.mxu0 0.0
    %480 = vmatprep.subr.mxu0 0.0
    %481 = vmatpush2.msra.mxu0 0.0
    %482 = vmatprep.subr.mxu0 0.0
    %483 = vmatpush2.msra.mxu0 0.0
    %484 = vmatprep.subr.mxu0 0.0
    %485 = vmatpush2.msra.mxu0 0.0
    %486 = vmatprep.subr.mxu0 0.0
    %487 = vmatpush2.msra.mxu0 0.0
    %488 = vmatprep.subr.mxu0 0.0
    %489 = vmatpush2.msra.mxu0 0.0
    %490 = vmatprep.subr.mxu0 0.0
    %491 = vmatpush2.msra.mxu0 0.0
    %492 = vmatprep.mubr.f32.mxu0 0.0
    %493 = vmatmul.mubr.f32.gmra.mxu0 %v291
    %v494 = vpop.f32.mrf.mxu0
    %v495 = vadd.f32 %v410, %v494
    %v496 = vpop.f32.mrf.mxu0
    %497 = vmatprep.mubr.f32.mxu0 0.0
    %498 = vmatmul.mubr.f32.gmra.mxu0 %v292
    %v499 = vpop.f32.mrf.mxu0
    %v500 = vadd.f32 %v415, %v499
    %v501 = vpop.f32.mrf.mxu0
    %502 = vmatprep.mubr.f32.mxu0 0.0
    %503 = vmatmul.mubr.f32.gmra.mxu0 %v293
    %v504 = vpop.f32.mrf.mxu0
    %v505 = vadd.f32 %v420, %v504
    %v506 = vpop.f32.mrf.mxu0
    %507 = vmatprep.mubr.f32.mxu0 0.0
    %508 = vmatmul.mubr.f32.gmra.mxu0 %v294
    %v509 = vpop.f32.mrf.mxu0
    %v510 = vadd.f32 %v425, %v509
    %v511 = vpop.f32.mrf.mxu0
    %512 = vdwg.mxu0
    %v513 = vrot.slane %v274, 7
    %v514 = vrot.slane %v275, 7
    %v515 = vrot.slane %v276, 7
    %v516 = vrot.slane %v277, 7
    %vm517 = vcmp.lt.s32.totalorder %v192, 1
    %v518 = vsel %vm517, %v515, %v516
    %v519 = vsel %vm517, %v514, %v515
    %v520 = vsel %vm517, %v513, %v514
    %v521 = vsel %vm517, %v516, %v513
    %v522 = vld [vmem:[#allocation5 + $0x240] sm:$0xff]
    %v523 = vld [vmem:[#allocation5 + $0x248] sm:$0xff]
    %v524 = vld [vmem:[#allocation5 + $0x250] sm:$0xff]
    %v525 = vld [vmem:[#allocation5 + $0x258] sm:$0xff]
    %v526 = vmul.f32 %v521, %v522
    %v527 = vmul.f32 %v520, %v523
    %v528 = vmul.f32 %v519, %v524
    %v529 = vmul.f32 %v518, %v525
    %v530 = vld [vmem:[#allocation5 + $0x100] sm:$0xff]
    %v531 = vld [vmem:[#allocation5 + $0x108] sm:$0xff]
    %v532 = vld [vmem:[#allocation5 + $0x110] sm:$0xff]
    %v533 = vld [vmem:[#allocation5 + $0x118] sm:$0xff]
    %v534 = vld [vmem:[#allocation5 + $0x120] sm:$0xff]
    %v535 = vld [vmem:[#allocation5 + $0x128] sm:$0xff]
    %v536 = vld [vmem:[#allocation5 + $0x130] sm:$0xff]
    %v537 = vld [vmem:[#allocation5 + $0x138] sm:$0xff]
    %v538 = vld [vmem:[#allocation5 + $0x140] sm:$0xff]
    %v539 = vld [vmem:[#allocation5 + $0x148] sm:$0xff]
    %v540 = vld [vmem:[#allocation5 + $0x150] sm:$0xff]
    %v541 = vld [vmem:[#allocation5 + $0x158] sm:$0xff]
    %v542 = vld [vmem:[#allocation5 + $0x160] sm:$0xff]
    %v543 = vld [vmem:[#allocation5 + $0x168] sm:$0xff]
    %v544 = vld [vmem:[#allocation5 + $0x170] sm:$0xff]
    %v545 = vld [vmem:[#allocation5 + $0x178] sm:$0xff]
    %546 = vmatprep.subr.mxu0 0.0
    %547 = vmatpush1.msra.mxu0 %v545
    %548 = vmatprep.subr.mxu0 0.0
    %549 = vmatpush1.msra.mxu0 %v544
    %550 = vmatprep.subr.mxu0 0.0
    %551 = vmatpush1.msra.mxu0 %v543
    %552 = vmatprep.subr.mxu0 0.0
    %553 = vmatpush1.msra.mxu0 %v542
    %554 = vmatprep.subr.mxu0 0.0
    %555 = vmatpush1.msra.mxu0 %v541
    %556 = vmatprep.subr.mxu0 0.0
    %557 = vmatpush1.msra.mxu0 %v540
    %558 = vmatprep.subr.mxu0 0.0
    %559 = vmatpush1.msra.mxu0 %v539
    %560 = vmatprep.subr.mxu0 0.0
    %561 = vmatpush1.msra.mxu0 %v538
    %562 = vmatprep.subr.mxu0 0.0
    %563 = vmatpush1.msra.mxu0 %v537
    %564 = vmatprep.subr.mxu0 0.0
    %565 = vmatpush1.msra.mxu0 %v536
    %566 = vmatprep.subr.mxu0 0.0
    %567 = vmatpush1.msra.mxu0 %v535
    %568 = vmatprep.subr.mxu0 0.0
    %569 = vmatpush1.msra.mxu0 %v534
    %570 = vmatprep.subr.mxu0 0.0
    %571 = vmatpush1.msra.mxu0 %v533
    %572 = vmatprep.subr.mxu0 0.0
    %573 = vmatpush1.msra.mxu0 %v532
    %574 = vmatprep.subr.mxu0 0.0
    %575 = vmatpush1.msra.mxu0 %v531
    %576 = vmatprep.subr.mxu0 0.0
    %577 = vmatpush1.msra.mxu0 %v530
    %578 = vmatprep.subr.mxu0 0.0
    %579 = vmatpush2.msra.mxu0 0.0
    %580 = vmatprep.subr.mxu0 0.0
    %581 = vmatpush2.msra.mxu0 0.0
    %582 = vmatprep.subr.mxu0 0.0
    %583 = vmatpush2.msra.mxu0 0.0
    %584 = vmatprep.subr.mxu0 0.0
    %585 = vmatpush2.msra.mxu0 0.0
    %586 = vmatprep.subr.mxu0 0.0
    %587 = vmatpush2.msra.mxu0 0.0
    %588 = vmatprep.subr.mxu0 0.0
    %589 = vmatpush2.msra.mxu0 0.0
    %590 = vmatprep.subr.mxu0 0.0
    %591 = vmatpush2.msra.mxu0 0.0
    %592 = vmatprep.subr.mxu0 0.0
    %593 = vmatpush2.msra.mxu0 0.0
    %594 = vmatprep.subr.mxu0 0.0
    %595 = vmatpush2.msra.mxu0 0.0
    %596 = vmatprep.subr.mxu0 0.0
    %597 = vmatpush2.msra.mxu0 0.0
    %598 = vmatprep.subr.mxu0 0.0
    %599 = vmatpush2.msra.mxu0 0.0
    %600 = vmatprep.subr.mxu0 0.0
    %601 = vmatpush2.msra.mxu0 0.0
    %602 = vmatprep.subr.mxu0 0.0
    %603 = vmatpush2.msra.mxu0 0.0
    %604 = vmatprep.subr.mxu0 0.0
    %605 = vmatpush2.msra.mxu0 0.0
    %606 = vmatprep.subr.mxu0 0.0
    %607 = vmatpush2.msra.mxu0 0.0
    %608 = vmatprep.subr.mxu0 0.0
    %609 = vmatpush2.msra.mxu0 0.0
    %610 = vmatprep.mubr.f32.mxu0 0.0
    %611 = vmatmul.mubr.f32.gmra.mxu0 %v526
    %v612 = vpop.f32.mrf.mxu0
    %v613 = vadd.f32 0.0, %v612
    %v614 = vpop.f32.mrf.mxu0
    %615 = vmatprep.mubr.f32.mxu0 0.0
    %616 = vmatmul.mubr.f32.gmra.mxu0 %v527
    %v617 = vpop.f32.mrf.mxu0
    %v618 = vadd.f32 0.0, %v617
    %v619 = vpop.f32.mrf.mxu0
    %620 = vmatprep.mubr.f32.mxu0 0.0
    %621 = vmatmul.mubr.f32.gmra.mxu0 %v528
    %v622 = vpop.f32.mrf.mxu0
    %v623 = vadd.f32 0.0, %v622
    %v624 = vpop.f32.mrf.mxu0
    %625 = vmatprep.mubr.f32.mxu0 0.0
    %626 = vmatmul.mubr.f32.gmra.mxu0 %v529
    %v627 = vpop.f32.mrf.mxu0
    %v628 = vadd.f32 0.0, %v627
    %v629 = vpop.f32.mrf.mxu0
    %630 = vdwg.mxu0
    %v631 = vadd.f32 %v495, %v613
    %v632 = vadd.f32 %v500, %v618
    %v633 = vadd.f32 %v505, %v623
    %v634 = vadd.f32 %v510, %v628
    %v635 = vld [vmem:[#allocation5 + $0x260] sm:$0xff]
    %v636 = vld [vmem:[#allocation5 + $0x268] sm:$0xff]
    %v637 = vld [vmem:[#allocation5 + $0x270] sm:$0xff]
    %v638 = vld [vmem:[#allocation5 + $0x278] sm:$0xff]
    %v639 = vmul.f32 %v274, %v635
    %v640 = vmul.f32 %v275, %v636
    %v641 = vmul.f32 %v276, %v637
    %v642 = vmul.f32 %v277, %v638
    %v643 = vld [vmem:[#allocation5 + $0x180] sm:$0xff]
    %v644 = vld [vmem:[#allocation5 + $0x188] sm:$0xff]
    %v645 = vld [vmem:[#allocation5 + $0x190] sm:$0xff]
    %v646 = vld [vmem:[#allocation5 + $0x198] sm:$0xff]
    %v647 = vld [vmem:[#allocation5 + $0x1a0] sm:$0xff]
    %v648 = vld [vmem:[#allocation5 + $0x1a8] sm:$0xff]
    %v649 = vld [vmem:[#allocation5 + $0x1b0] sm:$0xff]
    %v650 = vld [vmem:[#allocation5 + $0x1b8] sm:$0xff]
    %v651 = vld [vmem:[#allocation5 + $0x1c0] sm:$0xff]
    %v652 = vld [vmem:[#allocation5 + $0x1c8] sm:$0xff]
    %v653 = vld [vmem:[#allocation5 + $0x1d0] sm:$0xff]
    %v654 = vld [vmem:[#allocation5 + $0x1d8] sm:$0xff]
    %v655 = vld [vmem:[#allocation5 + $0x1e0] sm:$0xff]
    %v656 = vld [vmem:[#allocation5 + $0x1e8] sm:$0xff]
    %v657 = vld [vmem:[#allocation5 + $0x1f0] sm:$0xff]
    %v658 = vld [vmem:[#allocation5 + $0x1f8] sm:$0xff]
    %659 = vmatprep.subr.mxu0 0.0
    %660 = vmatpush1.msra.mxu0 %v658
    %661 = vmatprep.subr.mxu0 0.0
    %662 = vmatpush1.msra.mxu0 %v657
    %663 = vmatprep.subr.mxu0 0.0
    %664 = vmatpush1.msra.mxu0 %v656
    %665 = vmatprep.subr.mxu0 0.0
    %666 = vmatpush1.msra.mxu0 %v655
    %667 = vmatprep.subr.mxu0 0.0
    %668 = vmatpush1.msra.mxu0 %v654
    %669 = vmatprep.subr.mxu0 0.0
    %670 = vmatpush1.msra.mxu0 %v653
    %671 = vmatprep.subr.mxu0 0.0
    %672 = vmatpush1.msra.mxu0 %v652
    %673 = vmatprep.subr.mxu0 0.0
    %674 = vmatpush1.msra.mxu0 %v651
    %675 = vmatprep.subr.mxu0 0.0
    %676 = vmatpush1.msra.mxu0 %v650
    %677 = vmatprep.subr.mxu0 0.0
    %678 = vmatpush1.msra.mxu0 %v649
    %679 = vmatprep.subr.mxu0 0.0
    %680 = vmatpush1.msra.mxu0 %v648
    %681 = vmatprep.subr.mxu0 0.0
    %682 = vmatpush1.msra.mxu0 %v647
    %683 = vmatprep.subr.mxu0 0.0
    %684 = vmatpush1.msra.mxu0 %v646
    %685 = vmatprep.subr.mxu0 0.0
    %686 = vmatpush1.msra.mxu0 %v645
    %687 = vmatprep.subr.mxu0 0.0
    %688 = vmatpush1.msra.mxu0 %v644
    %689 = vmatprep.subr.mxu0 0.0
    %690 = vmatpush1.msra.mxu0 %v643
    %691 = vmatprep.subr.mxu0 0.0
    %692 = vmatpush2.msra.mxu0 0.0
    %693 = vmatprep.subr.mxu0 0.0
    %694 = vmatpush2.msra.mxu0 0.0
    %695 = vmatprep.subr.mxu0 0.0
    %696 = vmatpush2.msra.mxu0 0.0
    %697 = vmatprep.subr.mxu0 0.0
    %698 = vmatpush2.msra.mxu0 0.0
    %699 = vmatprep.subr.mxu0 0.0
    %700 = vmatpush2.msra.mxu0 0.0
    %701 = vmatprep.subr.mxu0 0.0
    %702 = vmatpush2.msra.mxu0 0.0
    %703 = vmatprep.subr.mxu0 0.0
    %704 = vmatpush2.msra.mxu0 0.0
    %705 = vmatprep.subr.mxu0 0.0
    %706 = vmatpush2.msra.mxu0 0.0
    %707 = vmatprep.subr.mxu0 0.0
    %708 = vmatpush2.msra.mxu0 0.0
    %709 = vmatprep.subr.mxu0 0.0
    %710 = vmatpush2.msra.mxu0 0.0
    %711 = vmatprep.subr.mxu0 0.0
    %712 = vmatpush2.msra.mxu0 0.0
    %713 = vmatprep.subr.mxu0 0.0
    %714 = vmatpush2.msra.mxu0 0.0
    %715 = vmatprep.subr.mxu0 0.0
    %716 = vmatpush2.msra.mxu0 0.0
    %717 = vmatprep.subr.mxu0 0.0
    %718 = vmatpush2.msra.mxu0 0.0
    %719 = vmatprep.subr.mxu0 0.0
    %720 = vmatpush2.msra.mxu0 0.0
    %721 = vmatprep.subr.mxu0 0.0
    %722 = vmatpush2.msra.mxu0 0.0
    %723 = vmatprep.mubr.f32.mxu0 0.0
    %724 = vmatmul.mubr.f32.gmra.mxu0 %v639
    %v725 = vpop.f32.mrf.mxu0
    %v726 = vadd.f32 0.0, %v725
    %v727 = vpop.f32.mrf.mxu0
    %728 = vmatprep.mubr.f32.mxu0 0.0
    %729 = vmatmul.mubr.f32.gmra.mxu0 %v640
    %v730 = vpop.f32.mrf.mxu0
    %v731 = vadd.f32 0.0, %v730
    %v732 = vpop.f32.mrf.mxu0
    %733 = vmatprep.mubr.f32.mxu0 0.0
    %734 = vmatmul.mubr.f32.gmra.mxu0 %v641
    %v735 = vpop.f32.mrf.mxu0
    %v736 = vadd.f32 0.0, %v735
    %v737 = vpop.f32.mrf.mxu0
    %738 = vmatprep.mubr.f32.mxu0 0.0
    %739 = vmatmul.mubr.f32.gmra.mxu0 %v642
    %v740 = vpop.f32.mrf.mxu0
    %v741 = vadd.f32 0.0, %v740
    %v742 = vpop.f32.mrf.mxu0
    %743 = vdwg.mxu0
    %v744 = vadd.f32 %v631, %v726
    %v745 = vadd.f32 %v632, %v731
    %v746 = vadd.f32 %v633, %v736
    %v747 = vadd.f32 %v634, %v741
    %v748 = vld [vmem:[#allocation5 + $0x2e8] sm:$0x1]
    %v749 = vlaneseq
    %v750 = vshrl.u32 %v749, 7
    %v751 = vsub.s32 0, %v750
    %v752 = vrot.slane %v748, %v751
    %v753 = vadd.f32 %v744, %v752
    %v754 = vadd.f32 %v745, %v752
    %v755 = vadd.f32 %v746, %v752
    %v756 = vadd.f32 %v747, %v752
    %v757 = vmul.f32 %v753, 0.5
    %v758 = vmul.f32 %v754, 0.5
    %v759 = vmul.f32 %v755, 0.5
    %v760 = vmul.f32 %v756, 0.5
    %v761 = vmul.f32 %v753, 0.044715
    %v762 = vmul.f32 %v754, 0.044715
    %v763 = vmul.f32 %v755, 0.044715
    %v764 = vmul.f32 %v756, 0.044715
    %v765 = vmul.f32 %v761, %v753
    %v766 = vmul.f32 %v762, %v754
    %v767 = vmul.f32 %v763, %v755
    %v768 = vmul.f32 %v764, %v756
    %v769 = vmul.f32 %v765, %v753
    %v770 = vmul.f32 %v766, %v754
    %v771 = vmul.f32 %v767, %v755
    %v772 = vmul.f32 %v768, %v756
    %v773 = vadd.f32 %v753, %v769
    %v774 = vadd.f32 %v754, %v770
    %v775 = vadd.f32 %v755, %v771
    %v776 = vadd.f32 %v756, %v772
    %v777 = vmul.f32 %v773, 0.7978846
    %v778 = vmul.f32 %v774, 0.7978846
    %v779 = vmul.f32 %v775, 0.7978846
    %v780 = vmul.f32 %v776, 0.7978846
    %v781 = vtanh.pop %v777
    %v782 = vtanh.pop %v778
    %v783 = vtanh.pop %v779
    %v784 = vtanh.pop %v780
    %v785 = vadd.f32 %v781, 1.0
    %v786 = vadd.f32 %v782, 1.0
    %v787 = vadd.f32 %v783, 1.0
    %v788 = vadd.f32 %v784, 1.0
    %v789 = vmul.f32 %v757, %v785
    %v790 = vmul.f32 %v758, %v786
    %v791 = vmul.f32 %v759, %v787
    %v792 = vmul.f32 %v760, %v788
    %v793 = vld [vmem:[#allocation5 + $0x2a0] sm:$0xff]
    %v794 = vld [vmem:[#allocation5 + $0x2a8] sm:$0xff]
    %v795 = vld [vmem:[#allocation5 + $0x2b0] sm:$0xff]
    %v796 = vld [vmem:[#allocation5 + $0x2b8] sm:$0xff]
    %v797 = vld [vmem:[#allocation5 + $0x2c0] sm:$0xff]
    %v798 = vld [vmem:[#allocation5 + $0x2c8] sm:$0xff]
    %v799 = vld [vmem:[#allocation5 + $0x2d0] sm:$0xff]
    %v800 = vld [vmem:[#allocation5 + $0x2d8] sm:$0xff]
    %v801 = vld [vmem:[#allocation5 + $0x2f0] sm:$0x1]
    %v802 = vlaneseq
    %v803 = vshrl.u32 %v802, 7
    %v804 = vsub.s32 0, %v803
    %v805 = vrot.slane %v801, %v804
    %v807 = vsel %vm268, %v789, 0
    %v810 = vsel %vm268, %v790, 0
    %v813 = vsel %vm268, %v791, 0
    %v816 = vsel %vm268, %v792, 0
    %818 = vmatprep.subr.mxu0 0.0
    %819 = vmatpush1.msra.mxu0 0.0
    %820 = vmatprep.subr.mxu0 0.0
    %821 = vmatpush1.msra.mxu0 0.0
    %822 = vmatprep.subr.mxu0 0.0
    %823 = vmatpush1.msra.mxu0 0.0
    %824 = vmatprep.subr.mxu0 0.0
    %825 = vmatpush1.msra.mxu0 0.0
    %826 = vmatprep.subr.mxu0 0.0
    %827 = vmatpush1.msra.mxu0 0.0
    %828 = vmatprep.subr.mxu0 0.0
    %829 = vmatpush1.msra.mxu0 0.0
    %830 = vmatprep.subr.mxu0 0.0
    %831 = vmatpush1.msra.mxu0 0.0
    %832 = vmatprep.subr.mxu0 0.0
    %833 = vmatpush1.msra.mxu0 0.0
    %834 = vmatprep.subr.mxu0 0.0
    %835 = vmatpush1.msra.mxu0 %v800
    %836 = vmatprep.subr.mxu0 0.0
    %837 = vmatpush1.msra.mxu0 %v799
    %838 = vmatprep.subr.mxu0 0.0
    %839 = vmatpush1.msra.mxu0 %v798
    %840 = vmatprep.subr.mxu0 0.0
    %841 = vmatpush1.msra.mxu0 %v797
    %842 = vmatprep.subr.mxu0 0.0
    %843 = vmatpush1.msra.mxu0 %v796
    %844 = vmatprep.subr.mxu0 0.0
    %845 = vmatpush1.msra.mxu0 %v795
    %846 = vmatprep.subr.mxu0 0.0
    %847 = vmatpush1.msra.mxu0 %v794
    %848 = vmatprep.subr.mxu0 0.0
    %849 = vmatpush1.msra.mxu0 %v793
    %850 = vmatprep.subr.mxu0 0.0
    %851 = vmatpush2.msra.mxu0 0.0
    %852 = vmatprep.subr.mxu0 0.0
    %853 = vmatpush2.msra.mxu0 0.0
    %854 = vmatprep.subr.mxu0 0.0
    %855 = vmatpush2.msra.mxu0 0.0
    %856 = vmatprep.subr.mxu0 0.0
    %857 = vmatpush2.msra.mxu0 0.0
    %858 = vmatprep.subr.mxu0 0.0
    %859 = vmatpush2.msra.mxu0 0.0
    %860 = vmatprep.subr.mxu0 0.0
    %861 = vmatpush2.msra.mxu0 0.0
    %862 = vmatprep.subr.mxu0 0.0
    %863 = vmatpush2.msra.mxu0 0.0
    %864 = vmatprep.subr.mxu0 0.0
    %865 = vmatpush2.msra.mxu0 0.0
    %866 = vmatprep.subr.mxu0 0.0
    %867 = vmatpush2.msra.mxu0 0.0
    %868 = vmatprep.subr.mxu0 0.0
    %869 = vmatpush2.msra.mxu0 0.0
    %870 = vmatprep.subr.mxu0 0.0
    %871 = vmatpush2.msra.mxu0 0.0
    %872 = vmatprep.subr.mxu0 0.0
    %873 = vmatpush2.msra.mxu0 0.0
    %874 = vmatprep.subr.mxu0 0.0
    %875 = vmatpush2.msra.mxu0 0.0
    %876 = vmatprep.subr.mxu0 0.0
    %877 = vmatpush2.msra.mxu0 0.0
    %878 = vmatprep.subr.mxu0 0.0
    %879 = vmatpush2.msra.mxu0 0.0
    %880 = vmatprep.subr.mxu0 0.0
    %881 = vmatpush2.msra.mxu0 0.0
    %882 = vmatprep.mubr.f32.mxu0 0.0
    %883 = vmatmul.mubr.f32.gmra.mxu0 %v807
    %v884 = vpop.f32.mrf.mxu0
    %v885 = vadd.f32 %v805, %v884
    %v886 = vpop.f32.mrf.mxu0
    %887 = vmatprep.mubr.f32.mxu0 0.0
    %888 = vmatmul.mubr.f32.gmra.mxu0 %v810
    %v889 = vpop.f32.mrf.mxu0
    %v890 = vadd.f32 %v805, %v889
    %v891 = vpop.f32.mrf.mxu0
    %892 = vmatprep.mubr.f32.mxu0 0.0
    %893 = vmatmul.mubr.f32.gmra.mxu0 %v813
    %v894 = vpop.f32.mrf.mxu0
    %v895 = vadd.f32 %v805, %v894
    %v896 = vpop.f32.mrf.mxu0
    %897 = vmatprep.mubr.f32.mxu0 0.0
    %898 = vmatmul.mubr.f32.gmra.mxu0 %v816
    %v899 = vpop.f32.mrf.mxu0
    %v900 = vadd.f32 %v805, %v899
    %v901 = vpop.f32.mrf.mxu0
    %902 = vdwg.mxu0
    %v903 = vmul.f32 %v885, 0.5
    %v904 = vmul.f32 %v890, 0.5
    %v905 = vmul.f32 %v895, 0.5
    %v906 = vmul.f32 %v900, 0.5
    %v907 = vmul.f32 %v885, 0.044715
    %v908 = vmul.f32 %v890, 0.044715
    %v909 = vmul.f32 %v895, 0.044715
    %v910 = vmul.f32 %v900, 0.044715
    %v911 = vmul.f32 %v907, %v885
    %v912 = vmul.f32 %v908, %v890
    %v913 = vmul.f32 %v909, %v895
    %v914 = vmul.f32 %v910, %v900
    %v915 = vmul.f32 %v911, %v885
    %v916 = vmul.f32 %v912, %v890
    %v917 = vmul.f32 %v913, %v895
    %v918 = vmul.f32 %v914, %v900
    %v919 = vadd.f32 %v885, %v915
    %v920 = vadd.f32 %v890, %v916
    %v921 = vadd.f32 %v895, %v917
    %v922 = vadd.f32 %v900, %v918
    %v923 = vmul.f32 %v919, 0.7978846
    %v924 = vmul.f32 %v920, 0.7978846
    %v925 = vmul.f32 %v921, 0.7978846
    %v926 = vmul.f32 %v922, 0.7978846
    %v927 = vtanh.pop %v923
    %v928 = vtanh.pop %v924
    %v929 = vtanh.pop %v925
    %v930 = vtanh.pop %v926
    %v931 = vadd.f32 %v927, 1.0
    %v932 = vadd.f32 %v928, 1.0
    %v933 = vadd.f32 %v929, 1.0
    %v934 = vadd.f32 %v930, 1.0
    %v935 = vmul.f32 %v903, %v931
    %v936 = vmul.f32 %v904, %v932
    %v937 = vmul.f32 %v905, %v933
    %v938 = vmul.f32 %v906, %v934
    %939 = vst.msk [vmem:[#allocation7] sm:$0xff] %vm268, %v935
    %940 = vst.msk [vmem:[#allocation7 + $0x8] sm:$0xff] %vm268, %v936
    %941 = vst.msk [vmem:[#allocation7 + $0x10] sm:$0xff] %vm268, %v937
    %942 = vst.msk [vmem:[#allocation7 + $0x18] sm:$0xff] %vm268, %v938
    // Predicated region
    $region18: #{tpu_custom_call.1} parent=1 // pred_check
      _
    $region19: #{tpu_custom_call.1} parent=1 // pred_check_branch
      %944 = sbr.rel (0) target = $region21
    $region20: #{tpu_custom_call.1} parent=1 // pred_region
      %s946 = ssub.s32 512, 512
      %947 = vsyncadd [#allocation4], %s946
      %s948 = sshll.u32 [#allocation7], 4
      %s949 = int_to_ptr.vmem [resolvable:$true] %s948
      %954 = dma.vmem_to_hbm [thread:$0]  %s949, 512, %s2, [#allocation4], 128, 128, 8
    $region21: #{tpu_custom_call.1} parent=1 // pred_fallthru
      _
    // Predicated region
    $region22: #{tpu_custom_call.1} parent=1 // pred_check
      _
    $region23: #{tpu_custom_call.1} parent=1 // pred_check_branch
      %956 = sbr.rel (0) target = $region25
    $region24: #{tpu_custom_call.1} parent=1 // pred_region
      %957 = dma.done [#allocation4], 512
    $region25: #{tpu_custom_call.1} parent=1 // pred_fallthru
      _
    %958 = vsyncpa [#allocation3], 1
    %959 = vsyncpa [#allocation6], 1
    %960 = vsyncpa [#allocation4], 1

</llo_original>
